<compile_context>
chip_gen: v6e
topology: v6e:2x2x1
jax: 0.10.0
libtpu: 0.0.40
codegen_flags: <defaults>
</compile_context>

<pallas_src>
import math

import numpy as np

import jax
import jax.numpy as jnp
from jax import lax
from jax.experimental import pallas as pl
from jax.experimental.pallas import tpu as pltpu


# Below this many MACs the whole op runs as plain XLA (kernel launch +
# ~0.35us/grid-step overhead dominates for NAC-typical tiny shapes).
_XLA_FALLBACK_MACS = 1 << 20


def _round_up(x, m):
    return ((x + m - 1) // m) * m


def _vmem_limit_bytes(need_bytes):
    """Generation-aware VMEM limit: computed need + headroom, clamped to HW."""
    try:
        cap = int(pltpu.get_tpu_info().vmem_capacity_bytes)
    except Exception:
        cap = 64 * 1024 * 1024  # be conservative (v7x has 64 MiB per core)
    headroom = 12 * 1024 * 1024  # compiler-internal scratch etc.
    return int(min(need_bytes + headroom, int(cap * 0.9)))


# ----------------------------------------------------------------------------
# Pass 1: elementwise gating  W_t = tanh(tw_t) * sigmoid(sw_t)   (in, out)
# ----------------------------------------------------------------------------
def _gate_kernel(tw_ref, sw_ref, w_ref):
    # Gate in f32 (EUP transcendentals), then cast to the MXU compute dtype.
    tw = tw_ref[...].astype(jnp.float32)
    sw = sw_ref[...].astype(jnp.float32)
    w_ref[...] = (jnp.tanh(tw) * jax.nn.sigmoid(sw)).astype(w_ref.dtype)


def _gate_transposed(tw_t, sw_t, tk, tn, compute_dtype):
    in_pad, out_pad = tw_t.shape
    gi, gj = in_pad // tk, out_pad // tn
    in_sz = jnp.dtype(tw_t.dtype).itemsize
    out_sz = jnp.dtype(compute_dtype).itemsize
    need = 2 * 2 * tk * tn * in_sz + 2 * tk * tn * out_sz  # double-buffered I/O

    return pl.pallas_call(
        _gate_kernel,
        out_shape=jax.ShapeDtypeStruct((in_pad, out_pad), compute_dtype),
        grid_spec=pltpu.PrefetchScalarGridSpec(
            num_scalar_prefetch=0,
            grid=(gi, gj),
            in_specs=[
                pl.BlockSpec((tk, tn), lambda i, j: (i, j)),
                pl.BlockSpec((tk, tn), lambda i, j: (i, j)),
            ],
            out_specs=pl.BlockSpec((tk, tn), lambda i, j: (i, j)),
        ),
        compiler_params=pltpu.CompilerParams(
            dimension_semantics=("parallel", "parallel"),
            vmem_limit_bytes=_vmem_limit_bytes(need),
        ),
    )(tw_t, sw_t)


# ----------------------------------------------------------------------------
# Pass 2: standard tiled NN matmul  out = x @ W_t
# ----------------------------------------------------------------------------
def _nac_matmul_kernel(x_ref, w_ref, o_ref, acc_ref):
    k = pl.program_id(2)

    @pl.when(k == 0)
    def _():
        acc_ref[...] = jnp.zeros_like(acc_ref)

    acc_ref[...] += jnp.dot(
        x_ref[...], w_ref[...], preferred_element_type=jnp.float32
    )

    @pl.when(k == pl.num_programs(2) - 1)
    def _():
        o_ref[...] = acc_ref[...].astype(o_ref.dtype)


def _nac_matmul(xp, w_t, out_dtype, tm, tn, tk):
    b_pad, in_pad = xp.shape
    _, out_pad = w_t.shape
    ni, nj, nk = b_pad // tm, out_pad // tn, in_pad // tk

    c_sz = jnp.dtype(xp.dtype).itemsize
    o_sz = jnp.dtype(out_dtype).itemsize
    need = (
        2 * tm * tk * c_sz        # double-buffered x tiles
        + 2 * tk * tn * c_sz      # double-buffered W tiles
        + 2 * tm * tn * o_sz      # double-buffered out tiles
        + tm * tn * 4             # f32 accumulator
    )
    # NOTE: if profiling shows exposed x-DMA on v6e/v5e, pipeline_mode=
    # pl.Buffered(3) on the x BlockSpec is a cheap follow-up (VMEM is ample).

    return pl.pallas_call(
        _nac_matmul_kernel,
        out_shape=jax.ShapeDtypeStruct((b_pad, out_pad), out_dtype),
        grid_spec=pltpu.PrefetchScalarGridSpec(
            num_scalar_prefetch=0,
            grid=(ni, nj, nk),
            in_specs=[
                pl.BlockSpec((tm, tk), lambda i, j, k: (i, k)),  # x tile
                pl.BlockSpec((tk, tn), lambda i, j, k: (k, j)),  # W_t tile
            ],
            out_specs=pl.BlockSpec((tm, tn), lambda i, j, k: (i, j)),
            scratch_shapes=[pltpu.VMEM((tm, tn), jnp.float32)],
        ),
        compiler_params=pltpu.CompilerParams(
            dimension_semantics=("parallel", "parallel", "arbitrary"),
            vmem_limit_bytes=_vmem_limit_bytes(need),
        ),
    )(xp, w_t)


# ----------------------------------------------------------------------------
# Plain-XLA fallback for tiny problems (kernel overhead dominates).
# ----------------------------------------------------------------------------
def _nac_xla(x, tanh_weights, sigmoid_weights):
    w = jnp.tanh(tanh_weights.astype(jnp.float32)) * jax.nn.sigmoid(
        sigmoid_weights.astype(jnp.float32)
    )
    out = jnp.dot(
        x.astype(jnp.float32),
        w.T,
        preferred_element_type=jnp.float32,
        precision=lax.Precision.HIGHEST,
    )
    return out.astype(x.dtype)


# ----------------------------------------------------------------------------
# Public wrapper
# ----------------------------------------------------------------------------
def nac_forward(
    x,
    tanh_weights,
    sigmoid_weights,
    *,
    tm=None,
    tn=None,
    tk=None,
    use_bf16_matmul=None,
    allow_xla_fallback=True,
):
    batch, in_features = x.shape
    out_features, in_features_w = tanh_weights.shape
    assert in_features == in_features_w
    assert sigmoid_weights.shape == (out_features, in_features)

    if allow_xla_fallback and batch * in_features * out_features <= _XLA_FALLBACK_MACS:
        return _nac_xla(x, tanh_weights, sigmoid_weights)

    # MXU operand dtype: bf16 stays bf16; f32 stays f32 unless the caller opts
    # into the bf16 matmul (recommended on v5e). Accumulation is always f32.
    if use_bf16_matmul is None:
        use_bf16_matmul = x.dtype == jnp.bfloat16
    compute_dtype = jnp.bfloat16 if use_bf16_matmul else jnp.float32

    # Tile sizes: lane-dense (multiples of 128) last dims; batch rounded to the
    # dtype's native sublane packing (16 for bf16, 8 for f32).
    sub = 16 if compute_dtype == jnp.bfloat16 else 8
    if tm is None:
        tm = min(512, _round_up(batch, sub))
    if tn is None:
        tn = min(512, _round_up(out_features, 128))
    if tk is None:
        tk = min(512, _round_up(in_features, 128))

    b_pad = _round_up(batch, tm)
    out_pad = _round_up(out_features, tn)
    in_pad = _round_up(in_features, tk)

    # x: cast (only if needed) and pad (only if needed).
    # TODO(synk): for large unaligned shapes, mask the k-edge in-kernel instead
    # of materializing a zero-padded copy of x in HBM.
    xp = x if x.dtype == compute_dtype else x.astype(compute_dtype)
    if (b_pad, in_pad) != (batch, in_features):
        xp = jnp.pad(xp, ((0, b_pad - batch), (0, in_pad - in_features)))

    # Raw weights: one-time transpose to (in, out) layout so the matmul is a
    # plain NN dot; zero padding contributes nothing (tanh(0)*sigmoid(0)==0).
    def prep_w(w):
        wt = jnp.transpose(w)
        if (in_pad, out_pad) != (in_features, out_features):
            wt = jnp.pad(
                wt, ((0, in_pad - in_features), (0, out_pad - out_features))
            )
        return wt

    tw_t = prep_w(tanh_weights)
    sw_t = prep_w(sigmoid_weights)

    # Pass 1: gate once.  Pass 2: stream x against the gated weights.
    w_t = _gate_transposed(tw_t, sw_t, tk, tn, compute_dtype)
    out_padded = _nac_matmul(xp, w_t, x.dtype, tm, tn, tk)

    if (b_pad, out_pad) != (batch, out_features):
        return out_padded[:batch, :out_features]
    return out_padded


def xavier_uniform(key, shape, dtype=jnp.float32):
    # Matches torch.nn.init.xavier_uniform_ for a 2D (out, in) tensor.
    fan_out, fan_in = shape
    limit = math.sqrt(6.0 / (fan_in + fan_out))
    return jax.random.uniform(key, shape, dtype=dtype, minval=-limit, maxval=limit)


def _ref_nac(x, tw, sw):
    # float64 numpy reference (same math as the PyTorch module).
    x64 = np.asarray(x, dtype=np.float64)
    tw64 = np.asarray(tw, dtype=np.float64)
    sw64 = np.asarray(sw, dtype=np.float64)
    w = np.tanh(tw64) * (1.0 / (1.0 + np.exp(-sw64)))
    return x64 @ w.T


if __name__ == "__main__":
    key = jax.random.PRNGKey(0)
    k_x, k_tw, k_sw, k_x2, k_tw2, k_sw2 = jax.random.split(key, 6)

    # --- Small NAC-typical shape (matches the PyTorch module's usage) -------
    batch, in_features, out_features = 8, 32, 16
    x = jax.random.normal(k_x, (batch, in_features), dtype=jnp.float32)
    tw = xavier_uniform(k_tw, (out_features, in_features))
    sw = xavier_uniform(k_sw, (out_features, in_features))
    ref_small = _ref_nac(x, tw, sw)

    # Default path: tiny problem -> XLA bypass.
    out_small = jax.block_until_ready(nac_forward(x, tw, sw))
    assert out_small.shape == (batch, out_features)
    assert np.allclose(np.asarray(out_small), ref_small, atol=1e-4, rtol=1e-4)

    # Force the Pallas two-pass path at the same shape (exercises padding).
    out_small_pallas = jax.block_until_ready(
        nac_forward(x, tw, sw, allow_xla_fallback=False)
    )
    assert np.allclose(
        np.asarray(out_small_pallas), ref_small, atol=1e-4, rtol=1e-4
    )

    # --- Multi-tile shape: 2 batch tiles, 2 k tiles, unaligned out dim ------
    batch2, in2, out2 = 1024, 1024, 192
    x2 = jax.random.normal(k_x2, (batch2, in2), dtype=jnp.float32)
    tw2 = xavier_uniform(k_tw2, (out2, in2))
    sw2 = xavier_uniform(k_sw2, (out2, in2))

    out_big = jax.block_until_ready(nac_forward(x2, tw2, sw2))
    ref_big = _ref_nac(x2, tw2, sw2)
    assert out_big.shape == (batch2, out2)
    assert np.allclose(np.asarray(out_big), ref_big, atol=1e-3, rtol=1e-3)

    print("KERNEL_OK")
</pallas_src>

<mosaic_0001>
module attributes {stable_mosaic.version = 11 : i64} {
  func.func @_gate_kernel(%arg0: i32, %arg1: i32, %arg2: memref<128x128xf32, #tpu.memory_space<vmem>>, %arg3: memref<128x128xf32, #tpu.memory_space<vmem>>, %arg4: memref<128x128xf32, #tpu.memory_space<vmem>>) attributes {dimension_semantics = [#tpu.dimension_semantics<parallel>, #tpu.dimension_semantics<parallel>], iteration_bounds = array<i64: 1, 1>, scalar_prefetch = 0 : i64, scratch_operands = 0 : i64, tpu.core_type = #tpu.core_type<tc>, window_params = [{transform_indices = @transform_0, window_bounds = array<i64: 128, 128>}, {transform_indices = @transform_1, window_bounds = array<i64: 128, 128>}, {transform_indices = @transform_2, window_bounds = array<i64: 128, 128>}]} {
    %c0 = arith.constant 0 : index
    %c0_0 = arith.constant 0 : index
    %0 = vector.load %arg2[%c0, %c0_0] : memref<128x128xf32, #tpu.memory_space<vmem>>, vector<128x128xf32>
    %c0_1 = arith.constant 0 : index
    %c0_2 = arith.constant 0 : index
    %1 = vector.load %arg3[%c0_1, %c0_2] : memref<128x128xf32, #tpu.memory_space<vmem>>, vector<128x128xf32>
    %2 = math.tanh %0 : vector<128x128xf32>
    %3 = arith.negf %1 : vector<128x128xf32>
    %4 = math.exp %3 : vector<128x128xf32>
    %cst = arith.constant 1.000000e+00 : f32
    %5 = vector.broadcast %cst : f32 to vector<128x128xf32>
    %6 = arith.addf %5, %4 : vector<128x128xf32>
    %7 = arith.divf %5, %6 : vector<128x128xf32>
    %8 = arith.mulf %2, %7 : vector<128x128xf32>
    %c0_3 = arith.constant 0 : index
    %c0_4 = arith.constant 0 : index
    %9 = vector.load %arg4[%c0_3, %c0_4] : memref<128x128xf32, #tpu.memory_space<vmem>>, vector<128x128xf32>
    tpu.vector_store %arg4[%c0_3, %c0_4], %8 {strides = array<i32>} : memref<128x128xf32, #tpu.memory_space<vmem>>, vector<128x128xf32>,
    return
  }
  func.func @transform_0(%arg0: i32, %arg1: i32) -> (i32, i32) {
    %c0_i32 = arith.constant 0 : i32
    return %arg0, %arg1 : i32, i32
  }
  func.func @transform_1(%arg0: i32, %arg1: i32) -> (i32, i32) {
    %c0_i32 = arith.constant 0 : i32
    return %arg0, %arg1 : i32, i32
  }
  func.func @transform_2(%arg0: i32, %arg1: i32) -> (i32, i32) {
    %c0_i32 = arith.constant 0 : i32
    return %arg0, %arg1 : i32, i32
  }
}

</mosaic_0001>

<llo_original>
// kernel: tpu_custom_call.1
$region0: #{tpu_custom_call.1}
  #allocation0 [shape = 'u32[]', space=smem, size = 0x4, offset = 0x4, fixed_abs, tag = 'smem constant byte address 0x4 - core index']
  #allocation1 [shape = 'u32[144,128]{1,0:T(1,128)}', space=vmem, size = 0x12000, scoped, tag = 'internal scratch']
  %s0 = inlined_call_operand.hbm [shape: f32[128,128], index: 0, kind: input, shape index: {}]
  %s1 = inlined_call_operand.hbm [shape: f32[128,128], index: 1, kind: input, shape index: {}]
  %s2 = inlined_call_operand.hbm [shape: f32[128,128], index: 2, kind: output, shape index: {}]
  %s3 = sld [smem:[#allocation0]]
  $region26: #{tpu_custom_call.1} parent=0
    _
  %s5 = ssub.s32 1, %s3
  %s6 = scalar_select 0, %s5, %s3
  $region1: #{tpu_custom_call.1} parent=0
    #allocation2 [shape = 'u8[65536]{0}', space=vmem, size = 0x10000, scoped, tag = 'input window, operand 0, single buffered']
    #allocation3 [shape = 's32[1]{0}', space=sflag, size = 0x4, scoped, tag = 'scoped memory for tpu_custom_call.1']
    #allocation4 [shape = 's32[1]{0}', space=sflag, size = 0x4, scoped, tag = 'scoped memory for tpu_custom_call.1']
    #allocation5 [shape = 'u8[65536]{0}', space=vmem, size = 0x10000, scoped, tag = 'input window, operand 1, single buffered']
    #allocation6 [shape = 's32[1]{0}', space=sflag, size = 0x4, scoped, tag = 'scoped memory for tpu_custom_call.1']
    #allocation7 [shape = 'u8[65536]{0}', space=vmem, size = 0x10000, scoped, tag = 'output window, operand 0, single buffered']
    %7 = vsyncpa [#allocation3], 0
    %8 = vsyncpa [#allocation6], 0
    %9 = vsyncpa [#allocation4], 0
    // Predicated region
    $region2: #{tpu_custom_call.1} parent=1 // pred_check
      _
    $region3: #{tpu_custom_call.1} parent=1 // pred_check_branch
      %11 = sbr.rel (0) target = $region5
    $region4: #{tpu_custom_call.1} parent=1 // pred_region
      %s13 = ssub.s32 2048, 2048
      %14 = vsyncadd [#allocation3], %s13
      %s15 = sshll.u32 [#allocation2], 4
      %s16 = int_to_ptr.vmem [resolvable:$true] %s15
      %21 = dma.hbm_to_vmem [thread:$0]  %s0, 2048, %s16, [#allocation3], 128, 128, 8
    $region5: #{tpu_custom_call.1} parent=1 // pred_fallthru
      _
    // Predicated region
    $region6: #{tpu_custom_call.1} parent=1 // pred_check
      _
    $region7: #{tpu_custom_call.1} parent=1 // pred_check_branch
      %23 = sbr.rel (0) target = $region9
    $region8: #{tpu_custom_call.1} parent=1 // pred_region
      %s25 = ssub.s32 2048, 2048
      %26 = vsyncadd [#allocation6], %s25
      %s27 = sshll.u32 [#allocation5], 4
      %s28 = int_to_ptr.vmem [resolvable:$true] %s27
      %33 = dma.hbm_to_vmem [thread:$0]  %s1, 2048, %s28, [#allocation6], 128, 128, 8
    $region9: #{tpu_custom_call.1} parent=1 // pred_fallthru
      _
    // Predicated region
    $region10: #{tpu_custom_call.1} parent=1 // pred_check
      _
    $region11: #{tpu_custom_call.1} parent=1 // pred_check_branch
      %35 = sbr.rel (0) target = $region13
    $region12: #{tpu_custom_call.1} parent=1 // pred_region
      %36 = dma.done [#allocation3], 2048
    $region13: #{tpu_custom_call.1} parent=1 // pred_fallthru
      _
    // Predicated region
    $region14: #{tpu_custom_call.1} parent=1 // pred_check
      _
    $region15: #{tpu_custom_call.1} parent=1 // pred_check_branch
      %38 = sbr.rel (0) target = $region17
    $region16: #{tpu_custom_call.1} parent=1 // pred_region
      %39 = dma.done [#allocation6], 2048
    $region17: #{tpu_custom_call.1} parent=1 // pred_fallthru
      _
    %v40 = vld [vmem:[#allocation2] sm:$0xff]
    %v41 = vld [vmem:[#allocation2 + $0x8] sm:$0xff]
    %v42 = vld [vmem:[#allocation2 + $0x10] sm:$0xff]
    %v43 = vld [vmem:[#allocation2 + $0x18] sm:$0xff]
    %v44 = vld [vmem:[#allocation2 + $0x20] sm:$0xff]
    %v45 = vld [vmem:[#allocation2 + $0x28] sm:$0xff]
    %v46 = vld [vmem:[#allocation2 + $0x30] sm:$0xff]
    %v47 = vld [vmem:[#allocation2 + $0x38] sm:$0xff]
    %v48 = vld [vmem:[#allocation2 + $0x40] sm:$0xff]
    %v49 = vld [vmem:[#allocation2 + $0x48] sm:$0xff]
    %v50 = vld [vmem:[#allocation2 + $0x50] sm:$0xff]
    %v51 = vld [vmem:[#allocation2 + $0x58] sm:$0xff]
    %v52 = vld [vmem:[#allocation2 + $0x60] sm:$0xff]
    %v53 = vld [vmem:[#allocation2 + $0x68] sm:$0xff]
    %v54 = vld [vmem:[#allocation2 + $0x70] sm:$0xff]
    %v55 = vld [vmem:[#allocation2 + $0x78] sm:$0xff]
    %v56 = vld [vmem:[#allocation5] sm:$0xff]
    %v57 = vld [vmem:[#allocation5 + $0x8] sm:$0xff]
    %v58 = vld [vmem:[#allocation5 + $0x10] sm:$0xff]
    %v59 = vld [vmem:[#allocation5 + $0x18] sm:$0xff]
    %v60 = vld [vmem:[#allocation5 + $0x20] sm:$0xff]
    %v61 = vld [vmem:[#allocation5 + $0x28] sm:$0xff]
    %v62 = vld [vmem:[#allocation5 + $0x30] sm:$0xff]
    %v63 = vld [vmem:[#allocation5 + $0x38] sm:$0xff]
    %v64 = vld [vmem:[#allocation5 + $0x40] sm:$0xff]
    %v65 = vld [vmem:[#allocation5 + $0x48] sm:$0xff]
    %v66 = vld [vmem:[#allocation5 + $0x50] sm:$0xff]
    %v67 = vld [vmem:[#allocation5 + $0x58] sm:$0xff]
    %v68 = vld [vmem:[#allocation5 + $0x60] sm:$0xff]
    %v69 = vld [vmem:[#allocation5 + $0x68] sm:$0xff]
    %v70 = vld [vmem:[#allocation5 + $0x70] sm:$0xff]
    %v71 = vld [vmem:[#allocation5 + $0x78] sm:$0xff]
    %v72 = vtanh.pop %v40
    %v73 = vtanh.pop %v41
    %v74 = vtanh.pop %v42
    %v75 = vtanh.pop %v43
    %v76 = vtanh.pop %v44
    %v77 = vtanh.pop %v45
    %v78 = vtanh.pop %v46
    %v79 = vtanh.pop %v47
    %v80 = vtanh.pop %v48
    %v81 = vtanh.pop %v49
    %v82 = vtanh.pop %v50
    %v83 = vtanh.pop %v51
    %v84 = vtanh.pop %v52
    %v85 = vtanh.pop %v53
    %v86 = vtanh.pop %v54
    %v87 = vtanh.pop %v55
    %v88 = vxor.u32 %v56, 2147483648
    %v89 = vxor.u32 %v57, 2147483648
    %v90 = vxor.u32 %v58, 2147483648
    %v91 = vxor.u32 %v59, 2147483648
    %v92 = vxor.u32 %v60, 2147483648
    %v93 = vxor.u32 %v61, 2147483648
    %v94 = vxor.u32 %v62, 2147483648
    %v95 = vxor.u32 %v63, 2147483648
    %v96 = vxor.u32 %v64, 2147483648
    %v97 = vxor.u32 %v65, 2147483648
    %v98 = vxor.u32 %v66, 2147483648
    %v99 = vxor.u32 %v67, 2147483648
    %v100 = vxor.u32 %v68, 2147483648
    %v101 = vxor.u32 %v69, 2147483648
    %v102 = vxor.u32 %v70, 2147483648
    %v103 = vxor.u32 %v71, 2147483648
    %v104 = vmul.f32 %v88, 1.442695
    %v105 = vpow.pop %v104
    %v106 = vmul.f32 %v89, 1.442695
    %v107 = vpow.pop %v106
    %v108 = vmul.f32 %v90, 1.442695
    %v109 = vpow.pop %v108
    %v110 = vmul.f32 %v91, 1.442695
    %v111 = vpow.pop %v110
    %v112 = vmul.f32 %v92, 1.442695
    %v113 = vpow.pop %v112
    %v114 = vmul.f32 %v93, 1.442695
    %v115 = vpow.pop %v114
    %v116 = vmul.f32 %v94, 1.442695
    %v117 = vpow.pop %v116
    %v118 = vmul.f32 %v95, 1.442695
    %v119 = vpow.pop %v118
    %v120 = vmul.f32 %v96, 1.442695
    %v121 = vpow.pop %v120
    %v122 = vmul.f32 %v97, 1.442695
    %v123 = vpow.pop %v122
    %v124 = vmul.f32 %v98, 1.442695
    %v125 = vpow.pop %v124
    %v126 = vmul.f32 %v99, 1.442695
    %v127 = vpow.pop %v126
    %v128 = vmul.f32 %v100, 1.442695
    %v129 = vpow.pop %v128
    %v130 = vmul.f32 %v101, 1.442695
    %v131 = vpow.pop %v130
    %v132 = vmul.f32 %v102, 1.442695
    %v133 = vpow.pop %v132
    %v134 = vmul.f32 %v103, 1.442695
    %v135 = vpow.pop %v134
    %v136 = vadd.f32 %v105, 1.0
    %v137 = vadd.f32 %v107, 1.0
    %v138 = vadd.f32 %v109, 1.0
    %v139 = vadd.f32 %v111, 1.0
    %v140 = vadd.f32 %v113, 1.0
    %v141 = vadd.f32 %v115, 1.0
    %v142 = vadd.f32 %v117, 1.0
    %v143 = vadd.f32 %v119, 1.0
    %v144 = vadd.f32 %v121, 1.0
    %v145 = vadd.f32 %v123, 1.0
    %v146 = vadd.f32 %v125, 1.0
    %v147 = vadd.f32 %v127, 1.0
    %v148 = vadd.f32 %v129, 1.0
    %v149 = vadd.f32 %v131, 1.0
    %v150 = vadd.f32 %v133, 1.0
    %v151 = vadd.f32 %v135, 1.0
    %v152 = vrcp.pop %v136
    %v153 = vmul.f32 1.0, %v152
    %v154 = vrcp.pop %v137
    %v155 = vmul.f32 1.0, %v154
    %v156 = vrcp.pop %v138
    %v157 = vmul.f32 1.0, %v156
    %v158 = vrcp.pop %v139
    %v159 = vmul.f32 1.0, %v158
    %v160 = vrcp.pop %v140
    %v161 = vmul.f32 1.0, %v160
    %v162 = vrcp.pop %v141
    %v163 = vmul.f32 1.0, %v162
    %v164 = vrcp.pop %v142
    %v165 = vmul.f32 1.0, %v164
    %v166 = vrcp.pop %v143
    %v167 = vmul.f32 1.0, %v166
    %v168 = vrcp.pop %v144
    %v169 = vmul.f32 1.0, %v168
    %v170 = vrcp.pop %v145
    %v171 = vmul.f32 1.0, %v170
    %v172 = vrcp.pop %v146
    %v173 = vmul.f32 1.0, %v172
    %v174 = vrcp.pop %v147
    %v175 = vmul.f32 1.0, %v174
    %v176 = vrcp.pop %v148
    %v177 = vmul.f32 1.0, %v176
    %v178 = vrcp.pop %v149
    %v179 = vmul.f32 1.0, %v178
    %v180 = vrcp.pop %v150
    %v181 = vmul.f32 1.0, %v180
    %v182 = vrcp.pop %v151
    %v183 = vmul.f32 1.0, %v182
    %v184 = vmul.f32 %v72, %v153
    %v185 = vmul.f32 %v73, %v155
    %v186 = vmul.f32 %v74, %v157
    %v187 = vmul.f32 %v75, %v159
    %v188 = vmul.f32 %v76, %v161
    %v189 = vmul.f32 %v77, %v163
    %v190 = vmul.f32 %v78, %v165
    %v191 = vmul.f32 %v79, %v167
    %v192 = vmul.f32 %v80, %v169
    %v193 = vmul.f32 %v81, %v171
    %v194 = vmul.f32 %v82, %v173
    %v195 = vmul.f32 %v83, %v175
    %v196 = vmul.f32 %v84, %v177
    %v197 = vmul.f32 %v85, %v179
    %v198 = vmul.f32 %v86, %v181
    %v199 = vmul.f32 %v87, %v183
    %200 = vst [vmem:[#allocation7] sm:$0xff] %v184
    %201 = vst [vmem:[#allocation7 + $0x8] sm:$0xff] %v185
    %202 = vst [vmem:[#allocation7 + $0x10] sm:$0xff] %v186
    %203 = vst [vmem:[#allocation7 + $0x18] sm:$0xff] %v187
    %204 = vst [vmem:[#allocation7 + $0x20] sm:$0xff] %v188
    %205 = vst [vmem:[#allocation7 + $0x28] sm:$0xff] %v189
    %206 = vst [vmem:[#allocation7 + $0x30] sm:$0xff] %v190
    %207 = vst [vmem:[#allocation7 + $0x38] sm:$0xff] %v191
    %208 = vst [vmem:[#allocation7 + $0x40] sm:$0xff] %v192
    %209 = vst [vmem:[#allocation7 + $0x48] sm:$0xff] %v193
    %210 = vst [vmem:[#allocation7 + $0x50] sm:$0xff] %v194
    %211 = vst [vmem:[#allocation7 + $0x58] sm:$0xff] %v195
    %212 = vst [vmem:[#allocation7 + $0x60] sm:$0xff] %v196
    %213 = vst [vmem:[#allocation7 + $0x68] sm:$0xff] %v197
    %214 = vst [vmem:[#allocation7 + $0x70] sm:$0xff] %v198
    %215 = vst [vmem:[#allocation7 + $0x78] sm:$0xff] %v199
    // Predicated region
    $region18: #{tpu_custom_call.1} parent=1 // pred_check
      _
    $region19: #{tpu_custom_call.1} parent=1 // pred_check_branch
      %217 = sbr.rel (0) target = $region21
    $region20: #{tpu_custom_call.1} parent=1 // pred_region
      %s219 = ssub.s32 2048, 2048
      %220 = vsyncadd [#allocation4], %s219
      %s221 = sshll.u32 [#allocation7], 4
      %s222 = int_to_ptr.vmem [resolvable:$true] %s221
      %227 = dma.vmem_to_hbm [thread:$0]  %s222, 2048, %s2, [#allocation4], 128, 128, 8
    $region21: #{tpu_custom_call.1} parent=1 // pred_fallthru
      _
    // Predicated region
    $region22: #{tpu_custom_call.1} parent=1 // pred_check
      _
    $region23: #{tpu_custom_call.1} parent=1 // pred_check_branch
      %229 = sbr.rel (0) target = $region25
    $region24: #{tpu_custom_call.1} parent=1 // pred_region
      %230 = dma.done [#allocation4], 2048
    $region25: #{tpu_custom_call.1} parent=1 // pred_fallthru
      _
    %231 = vsyncpa [#allocation3], 1
    %232 = vsyncpa [#allocation6], 1
    %233 = vsyncpa [#allocation4], 1

</llo_original>
